<compile_context>
chip_gen: v7x
topology: tpu7x:2x2x1
jax: 0.10.0
libtpu: 0.0.40
codegen_flags: <defaults>
</compile_context>

<pallas_src>
import jax
import jax.numpy as jnp
from jax.experimental import pallas as pl
from jax.experimental.pallas import tpu as pltpu


def _round_up(x: int, m: int) -> int:
    return ((x + m - 1) // m) * m


def _tpu_config():
    """Per-generation VMEM capacity / TensorCore count (conservative fallbacks)."""
    vmem_capacity = None
    kind = ""
    try:
        info = pltpu.get_tpu_info()
        vmem_capacity = int(getattr(info, "vmem_capacity_bytes"))
    except Exception:
        vmem_capacity = None
    try:
        kind = jax.devices()[0].device_kind.lower()
    except Exception:
        kind = ""
    is_v7 = "v7" in kind
    is_v5 = "v5" in kind
    if vmem_capacity is None:
        vmem_capacity = (64 if is_v7 else 128) * 1024 * 1024
    num_cores = 2 if is_v7 else 1   # v7x has 2 TCs/chip; v5e/v6e have 1
    return vmem_capacity, num_cores, is_v5


def _make_kernel(margin: float, scale: float, n_negs: int, total_b: int,
                 tile_b: int, tiles_per_core: int, compute_dtype, needs_mask: bool):

    def kernel(anc_ref, pos_ref, *rest):
        neg_refs = rest[:n_negs]
        out_ref = rest[n_negs]
        core = pl.program_id(0)
        i = pl.program_id(1)

        # Per-core resident (1,1) accumulator: zero on that core's first tile.
        @pl.when(i == 0)
        def _init():
            out_ref[...] = jnp.zeros_like(out_ref)

        # bf16 VALU path on v6e/v7x when inputs are bf16; f32 otherwise.
        anc = anc_ref[...].astype(compute_dtype)                 # (TB, D)
        other = -pos_ref[...].astype(compute_dtype)              # (TB, D)
        for nref in neg_refs:
            other = other + nref[...].astype(compute_dtype)

        # Fused row-dot (up-cast before the cross-lane reduce / accumulation):
        #   c = sum(anc * (sum_n neg_n - pos), axis=1) + margin
        c = jnp.sum((anc * other).astype(jnp.float32),
                    axis=1, keepdims=True) + margin              # (TB, 1)

        # Faithful to PyTorch: log(1 + exp(scale*c)), no stabilized softplus.
        # TODO(synk): switch to a stabilized softplus (max(x,0)+log1p(exp(-|x|)))
        # if overflow-free behavior with many negatives is preferred.
        per = jnp.log(1.0 + jnp.exp(scale * c))                  # (TB, 1)

        start = (core * tiles_per_core + i) * tile_b             # global row of this tile

        if needs_mask:
            # Only tiles that overhang B (partial edge tile, or a clamped
            # fully-out-of-range tile on the extra core) pay the mask cost.
            is_partial = start + tile_b > total_b

            @pl.when(jnp.logical_not(is_partial))
            def _acc_full():
                out_ref[...] += jnp.sum(per, axis=0, keepdims=True)

            @pl.when(is_partial)
            def _acc_partial():
                row = start + jax.lax.broadcasted_iota(jnp.int32, per.shape, 0)
                # Keep this a select (NaN/Inf in garbage padded rows must not leak).
                masked = jnp.where(row < total_b, per, 0.0)
                out_ref[...] += jnp.sum(masked, axis=0, keepdims=True)
        else:
            out_ref[...] += jnp.sum(per, axis=0, keepdims=True)

    return kernel


def cosine_triplet_margin_loss(
    anc,
    pos,
    *negs,
    margin: float = 0.3,
    scale: float = 16.0,
    block_b: int | None = None,
    vmem_budget_bytes: int | None = None,
    input_buffer_count: int = 2,   # set 3 to sweep deeper buffering (e.g. on v5e)
):
    """JAX/Pallas equivalent of CosineTripletMarginLoss.forward."""
    assert len(negs) >= 1, "need at least one negative"
    B, D = anc.shape
    n_negs = len(negs)
    n_inputs = 2 + n_negs
    itemsize = jnp.dtype(anc.dtype).itemsize

    vmem_capacity, num_cores, is_v5 = _tpu_config()

    # Per-generation VMEM budget / scoped limit.
    if vmem_budget_bytes is None:
        if vmem_capacity <= 64 * 1024 * 1024:        # v7x (64 MiB physical)
            vmem_budget_bytes = 20 * 1024 * 1024
        else:                                        # v5e / v6e (128 MiB physical)
            vmem_budget_bytes = 56 * 1024 * 1024
    vmem_limit_bytes = (44 * 1024 * 1024 if vmem_capacity <= 64 * 1024 * 1024
                        else 96 * 1024 * 1024)

    # bf16 compute only where the VPU supports it (v6e/v7x); v5e stays f32.
    compute_dtype = (jnp.bfloat16
                     if (anc.dtype == jnp.bfloat16 and not is_v5)
                     else jnp.float32)

    if block_b is None:
        # Multi-buffered (TB, D) input tiles + in-kernel f32 intermediates
        # (anc / other / product ~ 3 * D * 4 bytes per row).
        bytes_per_row = n_inputs * input_buffer_count * D * itemsize + 3 * D * 4
        block_b = max(8, vmem_budget_bytes // max(1, bytes_per_row))
        block_b = min(block_b, 4096)   # raised cap: keep DMA/step >= ~2-4 MiB

    rows_per_core = -(-B // num_cores)
    block_b = int(max(8, min(_round_up(rows_per_core, 8), _round_up(int(block_b), 8))))

    num_tiles = -(-B // block_b)                     # total batch tiles
    num_cores = max(1, min(num_cores, num_tiles))    # don't spawn empty cores
    tiles_per_core = -(-num_tiles // num_cores)
    covered = num_cores * tiles_per_core * block_b
    needs_mask = covered != B

    kernel = _make_kernel(float(margin), float(scale), n_negs, B, block_b,
                          tiles_per_core, compute_dtype, needs_mask)

    def in_index_map(c, i):
        t = c * tiles_per_core + i
        if num_cores * tiles_per_core > num_tiles:
            # Clamp the (rare) fully out-of-range tile of the last core back to a
            # valid block; its contribution is masked to zero inside the kernel.
            t = jnp.minimum(t, num_tiles - 1)
        return (t, 0)

    if input_buffer_count != 2:
        in_spec = pl.BlockSpec((block_b, D), in_index_map,
                               pipeline_mode=pl.Buffered(input_buffer_count))
    else:
        in_spec = pl.BlockSpec((block_b, D), in_index_map)

    cost = pl.CostEstimate(
        flops=(n_negs + 2) * B * D,
        transcendentals=2 * B,
        bytes_accessed=n_inputs * B * D * itemsize + 4 * num_cores,
    )

    partial = pl.pallas_call(
        kernel,
        out_shape=jax.ShapeDtypeStruct((num_cores, 1), jnp.float32),
        grid=(num_cores, tiles_per_core),
        in_specs=[in_spec] * n_inputs,
        out_specs=pl.BlockSpec((1, 1), lambda c, i: (c, 0)),
        compiler_params=pltpu.CompilerParams(
            # Outer axis: batch split across TensorCores (v7x). Inner axis:
            # carries each core's resident accumulator.
            dimension_semantics=("parallel", "arbitrary"),
            vmem_limit_bytes=int(vmem_limit_bytes),
        ),
        cost_estimate=cost,
    )(anc, pos, *negs)

    # Cross-core reduce + mean in the wrapper (kernel stays finalize-free).
    return jnp.sum(partial) / B


def _reference(anc, pos, *negs, margin=0.3, scale=16.0):
    c = -jnp.sum(anc * pos, axis=1) + margin
    for neg in negs:
        c = c + jnp.sum(anc * neg, axis=1)
    return jnp.mean(jnp.log(1.0 + jnp.exp(scale * c)))


if __name__ == "__main__":
    key = jax.random.PRNGKey(0)

    def unit(x):
        return x / jnp.linalg.norm(x, axis=1, keepdims=True)

    # Case 1: single-tile path (B=8, D=128, 2 negatives), auto block size.
    B, D = 8, 128
    k1, k2, k3, k4, key = jax.random.split(key, 5)
    anc = unit(jax.random.normal(k1, (B, D), dtype=jnp.float32))
    pos = unit(jax.random.normal(k2, (B, D), dtype=jnp.float32))
    neg1 = unit(jax.random.normal(k3, (B, D), dtype=jnp.float32))
    neg2 = unit(jax.random.normal(k4, (B, D), dtype=jnp.float32))

    loss = jax.block_until_ready(cosine_triplet_margin_loss(anc, pos, neg1, neg2))
    ref = _reference(anc, pos, neg1, neg2)
    assert jnp.allclose(loss, ref, rtol=1e-5, atol=1e-5), (loss, ref)

    # Case 2: multi-tile grid + partial-tile masking (B=20 not a multiple of the
    # 8-row tile, 3 negatives), forced small block to exercise the masked path.
    B2, D2 = 20, 128
    ka, kp, kn1, kn2, kn3 = jax.random.split(key, 5)
    anc2 = unit(jax.random.normal(ka, (B2, D2), dtype=jnp.float32))
    pos2 = unit(jax.random.normal(kp, (B2, D2), dtype=jnp.float32))
    n1 = unit(jax.random.normal(kn1, (B2, D2), dtype=jnp.float32))
    n2 = unit(jax.random.normal(kn2, (B2, D2), dtype=jnp.float32))
    n3 = unit(jax.random.normal(kn3, (B2, D2), dtype=jnp.float32))

    loss2 = jax.block_until_ready(
        cosine_triplet_margin_loss(anc2, pos2, n1, n2, n3, block_b=8)
    )
    ref2 = _reference(anc2, pos2, n1, n2, n3)
    assert jnp.allclose(loss2, ref2, rtol=1e-5, atol=1e-5), (loss2, ref2)

    # Case 3: same ragged batch, default (large) block size path.
    loss3 = jax.block_until_ready(cosine_triplet_margin_loss(anc2, pos2, n1, n2, n3))
    assert jnp.allclose(loss3, ref2, rtol=1e-5, atol=1e-5), (loss3, ref2)

    print("KERNEL_OK")
</pallas_src>

<mosaic_0001>
module attributes {stable_mosaic.version = 11 : i64} {
  func.func @kernel(%arg0: i32, %arg1: i32, %arg2: memref<8x128xf32, #tpu.memory_space<vmem>>, %arg3: memref<8x128xf32, #tpu.memory_space<vmem>>, %arg4: memref<8x128xf32, #tpu.memory_space<vmem>>, %arg5: memref<8x128xf32, #tpu.memory_space<vmem>>, %arg6: memref<1x1xf32, #tpu.memory_space<vmem>>) attributes {dimension_semantics = [#tpu.dimension_semantics<parallel>, #tpu.dimension_semantics<arbitrary>], iteration_bounds = array<i64: 1, 1>, scalar_prefetch = 0 : i64, scratch_operands = 0 : i64, tpu.core_type = #tpu.core_type<tc>, window_params = [{transform_indices = @transform_0, window_bounds = array<i64: 8, 128>}, {transform_indices = @transform_1, window_bounds = array<i64: 8, 128>}, {transform_indices = @transform_2, window_bounds = array<i64: 8, 128>}, {transform_indices = @transform_3, window_bounds = array<i64: 8, 128>}, {transform_indices = @transform_4, window_bounds = array<i64: 1, 1>}]} {
    %c0_i32 = arith.constant 0 : i32
    %0 = arith.cmpi eq, %arg1, %c0_i32 : i32
    %1 = arith.extui %0 : i1 to i32
    %c0_i32_0 = arith.constant 0 : i32
    %2 = arith.cmpi ne, %1, %c0_i32_0 : i32
    scf.if %2 {
      %cst_17 = arith.constant 0.000000e+00 : f32
      %27 = vector.broadcast %cst_17 : f32 to vector<1x1xf32>
      %c0_18 = arith.constant 0 : index
      %c0_19 = arith.constant 0 : index
      %28 = vector.load %arg6[%c0_18, %c0_19] : memref<1x1xf32, #tpu.memory_space<vmem>>, vector<1x1xf32>
      tpu.vector_store %arg6[%c0_18, %c0_19], %27 {strides = array<i32>} : memref<1x1xf32, #tpu.memory_space<vmem>>, vector<1x1xf32>,
    } else {
    }
    %c0 = arith.constant 0 : index
    %c0_1 = arith.constant 0 : index
    %3 = vector.load %arg2[%c0, %c0_1] : memref<8x128xf32, #tpu.memory_space<vmem>>, vector<8x128xf32>
    %c0_2 = arith.constant 0 : index
    %c0_3 = arith.constant 0 : index
    %4 = vector.load %arg3[%c0_2, %c0_3] : memref<8x128xf32, #tpu.memory_space<vmem>>, vector<8x128xf32>
    %cst = arith.constant 0.000000e+00 : f32
    %5 = vector.broadcast %cst : f32 to vector<8x128xf32>
    %6 = arith.subf %5, %4 : vector<8x128xf32>
    %c0_4 = arith.constant 0 : index
    %c0_5 = arith.constant 0 : index
    %7 = vector.load %arg4[%c0_4, %c0_5] : memref<8x128xf32, #tpu.memory_space<vmem>>, vector<8x128xf32>
    %8 = arith.addf %6, %7 : vector<8x128xf32>
    %c0_6 = arith.constant 0 : index
    %c0_7 = arith.constant 0 : index
    %9 = vector.load %arg5[%c0_6, %c0_7] : memref<8x128xf32, #tpu.memory_space<vmem>>, vector<8x128xf32>
    %10 = arith.addf %8, %9 : vector<8x128xf32>
    %11 = arith.mulf %3, %10 : vector<8x128xf32>
    %cst_8 = arith.constant dense<0.000000e+00> : vector<8xf32>
    %12 = vector.multi_reduction <add>, %11, %cst_8 [1] : vector<8x128xf32> to vector<8xf32>
    %13 = vector.shape_cast %12 : vector<8xf32> to vector<8x1xf32>
    %cst_9 = arith.constant 3.000000e-01 : f32
    %14 = vector.broadcast %cst_9 : f32 to vector<8x1xf32>
    %15 = arith.addf %13, %14 : vector<8x1xf32>
    %cst_10 = arith.constant 1.600000e+01 : f32
    %16 = vector.broadcast %cst_10 : f32 to vector<8x1xf32>
    %17 = arith.mulf %16, %15 : vector<8x1xf32>
    %18 = math.exp %17 : vector<8x1xf32>
    %cst_11 = arith.constant 1.000000e+00 : f32
    %19 = vector.broadcast %cst_11 : f32 to vector<8x1xf32>
    %20 = arith.addf %19, %18 : vector<8x1xf32>
    %21 = math.log %20 : vector<8x1xf32>
    %c0_12 = arith.constant 0 : index
    %c0_13 = arith.constant 0 : index
    %22 = vector.load %arg6[%c0_12, %c0_13] : memref<1x1xf32, #tpu.memory_space<vmem>>, vector<1x1xf32>
    %cst_14 = arith.constant dense<0.000000e+00> : vector<1xf32>
    %23 = vector.multi_reduction <add>, %21, %cst_14 [0] : vector<8x1xf32> to vector<1xf32>
    %24 = vector.shape_cast %23 : vector<1xf32> to vector<1x1xf32>
    %25 = arith.addf %22, %24 : vector<1x1xf32>
    %c0_15 = arith.constant 0 : index
    %c0_16 = arith.constant 0 : index
    %26 = vector.load %arg6[%c0_15, %c0_16] : memref<1x1xf32, #tpu.memory_space<vmem>>, vector<1x1xf32>
    tpu.vector_store %arg6[%c0_15, %c0_16], %25 {strides = array<i32>} : memref<1x1xf32, #tpu.memory_space<vmem>>, vector<1x1xf32>,
    return
  }
  func.func @transform_0(%arg0: i32, %arg1: i32) -> (i32, i32) {
    %c1_i32 = arith.constant 1 : i32
    %0 = arith.muli %arg0, %c1_i32 : i32
    %1 = arith.addi %0, %arg1 : i32
    %c0_i32 = arith.constant 0 : i32
    %c0_i32_0 = arith.constant 0 : i32
    return %1, %c0_i32 : i32, i32
  }
  func.func @transform_1(%arg0: i32, %arg1: i32) -> (i32, i32) {
    %c1_i32 = arith.constant 1 : i32
    %0 = arith.muli %arg0, %c1_i32 : i32
    %1 = arith.addi %0, %arg1 : i32
    %c0_i32 = arith.constant 0 : i32
    %c0_i32_0 = arith.constant 0 : i32
    return %1, %c0_i32 : i32, i32
  }
  func.func @transform_2(%arg0: i32, %arg1: i32) -> (i32, i32) {
    %c1_i32 = arith.constant 1 : i32
    %0 = arith.muli %arg0, %c1_i32 : i32
    %1 = arith.addi %0, %arg1 : i32
    %c0_i32 = arith.constant 0 : i32
    %c0_i32_0 = arith.constant 0 : i32
    return %1, %c0_i32 : i32, i32
  }
  func.func @transform_3(%arg0: i32, %arg1: i32) -> (i32, i32) {
    %c1_i32 = arith.constant 1 : i32
    %0 = arith.muli %arg0, %c1_i32 : i32
    %1 = arith.addi %0, %arg1 : i32
    %c0_i32 = arith.constant 0 : i32
    %c0_i32_0 = arith.constant 0 : i32
    return %1, %c0_i32 : i32, i32
  }
  func.func @transform_4(%arg0: i32, %arg1: i32) -> (i32, i32) {
    %c0_i32 = arith.constant 0 : i32
    %c0_i32_0 = arith.constant 0 : i32
    return %arg0, %c0_i32 : i32, i32
  }
}

</mosaic_0001>

<llo_original>
// kernel: tpu_custom_call.1
$region0: #{tpu_custom_call.1}
  #allocation0 [shape = 'u32[]', space=smem, size = 0x4, offset = 0x4, fixed_abs, tag = 'smem constant byte address 0x4 - core index']
  #allocation1 [shape = 'u32[144,128]{1,0:T(1,128)}', space=vmem, size = 0x12000, scoped, tag = 'internal scratch']
  %s0 = inlined_call_operand.hbm [shape: f32[8,128], index: 0, kind: input, shape index: {}]
  %s1 = inlined_call_operand.hbm [shape: f32[8,128], index: 1, kind: input, shape index: {}]
  %s2 = inlined_call_operand.hbm [shape: f32[8,128], index: 2, kind: input, shape index: {}]
  %s3 = inlined_call_operand.hbm [shape: f32[8,128], index: 3, kind: input, shape index: {}]
  %s4 = inlined_call_operand.hbm [shape: f32[1,1], index: 4, kind: output, shape index: {}]
  %s5 = sld [smem:[#allocation0]]
  $region46: #{tpu_custom_call.1} parent=0
    _
  %s7 = ssub.s32 1, %s5
  %s8 = scalar_select 0, %s7, %s5
  $region1: #{tpu_custom_call.1} parent=0
    #allocation2 [shape = 'u8[4096]{0}', space=vmem, size = 0x1000, scoped, tag = 'input window, operand 0, single buffered']
    #allocation3 [shape = 's32[1]{0}', space=sflag, size = 0x4, scoped, tag = 'scoped memory for tpu_custom_call.1']
    #allocation4 [shape = 's32[1]{0}', space=sflag, size = 0x4, scoped, tag = 'scoped memory for tpu_custom_call.1']
    #allocation5 [shape = 'u8[4096]{0}', space=vmem, size = 0x1000, scoped, tag = 'input window, operand 1, single buffered']
    #allocation6 [shape = 's32[1]{0}', space=sflag, size = 0x4, scoped, tag = 'scoped memory for tpu_custom_call.1']
    #allocation7 [shape = 'u8[4096]{0}', space=vmem, size = 0x1000, scoped, tag = 'input window, operand 2, single buffered']
    #allocation8 [shape = 'u8[4096]{0}', space=vmem, size = 0x1000, scoped, tag = 'input window, operand 3, single buffered']
    #allocation9 [shape = 's32[1]{0}', space=sflag, size = 0x4, scoped, tag = 'scoped memory for tpu_custom_call.1']
    #allocation10 [shape = 'u8[512]{0}', space=vmem, size = 0x400, scoped, tag = 'output window, operand 0, single buffered']
    %9 = vsyncpa [#allocation3], 0
    %10 = vsyncpa [#allocation6], 0
    %11 = vsyncpa [#allocation9], 0
    %12 = vsyncpa [#allocation4], 0
    // Predicated region
    $region2: #{tpu_custom_call.1} parent=1 // pred_check
      _
    $region3: #{tpu_custom_call.1} parent=1 // pred_check_branch
      %14 = sbr.rel (0) target = $region5
    $region4: #{tpu_custom_call.1} parent=1 // pred_region
      %s15 = sadd.s32 0, 0
      %s17 = ssub.s32 128, 128
      %18 = vsyncadd [#allocation3], %s17
      %s19 = smul.addr %s15, 128
      %s20 = scalar_lea.hbm %s0, %s19
      %s22 = sshll.u32 [#allocation2], 4
      %s23 = int_to_ptr.vmem [resolvable:$true] %s22
      %25 = dma.hbm_to_vmem [thread:$0]  %s20, 128, %s23, [#allocation3]
    $region5: #{tpu_custom_call.1} parent=1 // pred_fallthru
      _
    // Predicated region
    $region6: #{tpu_custom_call.1} parent=1 // pred_check
      _
    $region7: #{tpu_custom_call.1} parent=1 // pred_check_branch
      %27 = sbr.rel (0) target = $region9
    $region8: #{tpu_custom_call.1} parent=1 // pred_region
      %s28 = sadd.s32 0, 0
      %s30 = ssub.s32 128, 128
      %31 = vsyncadd [#allocation6], %s30
      %s32 = smul.addr %s28, 128
      %s33 = scalar_lea.hbm %s1, %s32
      %s35 = sshll.u32 [#allocation5], 4
      %s36 = int_to_ptr.vmem [resolvable:$true] %s35
      %38 = dma.hbm_to_vmem [thread:$0]  %s33, 128, %s36, [#allocation6]
    $region9: #{tpu_custom_call.1} parent=1 // pred_fallthru
      _
    // Predicated region
    $region10: #{tpu_custom_call.1} parent=1 // pred_check
      _
    $region11: #{tpu_custom_call.1} parent=1 // pred_check_branch
      %40 = sbr.rel (0) target = $region13
    $region12: #{tpu_custom_call.1} parent=1 // pred_region
      %s41 = sadd.s32 0, 0
      %s43 = ssub.s32 128, 128
      %44 = vsyncadd [#allocation6], %s43
      %s45 = smul.addr %s41, 128
      %s46 = scalar_lea.hbm %s2, %s45
      %s48 = sshll.u32 [#allocation7], 4
      %s49 = int_to_ptr.vmem [resolvable:$true] %s48
      %51 = dma.hbm_to_vmem [thread:$0]  %s46, 128, %s49, [#allocation6]
    $region13: #{tpu_custom_call.1} parent=1 // pred_fallthru
      _
    // Predicated region
    $region14: #{tpu_custom_call.1} parent=1 // pred_check
      _
    $region15: #{tpu_custom_call.1} parent=1 // pred_check_branch
      %53 = sbr.rel (0) target = $region17
    $region16: #{tpu_custom_call.1} parent=1 // pred_region
      %s54 = sadd.s32 0, 0
      %s56 = ssub.s32 128, 128
      %57 = vsyncadd [#allocation9], %s56
      %s58 = smul.addr %s54, 128
      %s59 = scalar_lea.hbm %s3, %s58
      %s61 = sshll.u32 [#allocation8], 4
      %s62 = int_to_ptr.vmem [resolvable:$true] %s61
      %64 = dma.hbm_to_vmem [thread:$0]  %s59, 128, %s62, [#allocation9]
    $region17: #{tpu_custom_call.1} parent=1 // pred_fallthru
      _
    // Predicated region
    $region18: #{tpu_custom_call.1} parent=1 // pred_check
      _
    $region19: #{tpu_custom_call.1} parent=1 // pred_check_branch
      %66 = sbr.rel (0) target = $region21
    $region20: #{tpu_custom_call.1} parent=1 // pred_region
      %67 = dma.done [#allocation3], 128
    $region21: #{tpu_custom_call.1} parent=1 // pred_fallthru
      _
    // Predicated region
    $region22: #{tpu_custom_call.1} parent=1 // pred_check
      _
    $region23: #{tpu_custom_call.1} parent=1 // pred_check_branch
      %69 = sbr.rel (0) target = $region25
    $region24: #{tpu_custom_call.1} parent=1 // pred_region
      %70 = dma.done [#allocation6], 128
    $region25: #{tpu_custom_call.1} parent=1 // pred_fallthru
      _
    // Predicated region
    $region26: #{tpu_custom_call.1} parent=1 // pred_check
      _
    $region27: #{tpu_custom_call.1} parent=1 // pred_check_branch
      %72 = sbr.rel (0) target = $region29
    $region28: #{tpu_custom_call.1} parent=1 // pred_region
      %73 = dma.done [#allocation6], 128
    $region29: #{tpu_custom_call.1} parent=1 // pred_fallthru
      _
    // Predicated region
    $region30: #{tpu_custom_call.1} parent=1 // pred_check
      _
    $region31: #{tpu_custom_call.1} parent=1 // pred_check_branch
      %75 = sbr.rel (0) target = $region33
    $region32: #{tpu_custom_call.1} parent=1 // pred_region
      %76 = dma.done [#allocation9], 128
    $region33: #{tpu_custom_call.1} parent=1 // pred_fallthru
      _
    %s77 = sadd.s32 0, 0
    %s78 = sadd.s32 0, 0
    %s79 = sadd.s32 0, 0
    %s80 = sadd.s32 0, 0
    %p81 = scmp.eq.s32.totalorder 0, 0
    // Predicated region
    $region34: #{tpu_custom_call.1} parent=1 // pred_check
      %p82 = pneg %p81
    $region35: #{tpu_custom_call.1} parent=1 // pred_check_branch
      %84 = sbr.rel (%p82) target = $region37
    $region36: #{tpu_custom_call.1} parent=1 // pred_region
      %vm85 = vcmask 0
      %86 = vst.msk [vmem:[#allocation10] sm:$0x1] %vm85, 0.0
    $region37: #{tpu_custom_call.1} parent=1 // pred_fallthru
      _
    %v87 = vld [vmem:[#allocation2] sm:$0xff]
    %v88 = vld [vmem:[#allocation5] sm:$0xff]
    %v89 = vsub.f32 0.0, %v88
    %v90 = vld [vmem:[#allocation7] sm:$0xff]
    %v91 = vadd.f32 %v89, %v90
    %v92 = vld [vmem:[#allocation8] sm:$0xff]
    %v93 = vadd.f32 %v91, %v92
    %v94 = vmul.f32 %v87, %v93
    %95 = vadd.xlane.f32.xlu0 %v94
    %v96 = vpop.xlane.xlu0 %95
    %v97 = vadd.f32 %v96, 0.3
    %v98 = vmul.f32 %v97, 16.0
    %v99 = vmul.f32 %v98, 1.442695
    %v100 = vpow.pop %v99
    %v101 = vadd.f32 %v100, 1.0
    %v102 = vlog2.pop %v101
    %v103 = vmul.f32 %v102, 0.6931472
    %v104 = vld [vmem:[#allocation10] sm:$0x1]
    %v105 = vrot.slane %v103, 4
    %v106 = vadd.f32 %v103, %v105
    %v107 = vrot.slane %v106, 2
    %v108 = vadd.f32 %v106, %v107
    %v109 = vrot.slane %v108, 1
    %v110 = vadd.f32 %v108, %v109
    %v111 = vadd.f32 %v104, %v110
    %vm112 = vcmask 0
    %113 = vst.msk [vmem:[#allocation10] sm:$0x1] %vm112, %v111
    // Predicated region
    $region38: #{tpu_custom_call.1} parent=1 // pred_check
      _
    $region39: #{tpu_custom_call.1} parent=1 // pred_check_branch
      %115 = sbr.rel (0) target = $region41
    $region40: #{tpu_custom_call.1} parent=1 // pred_region
      %s117 = ssub.s32 16, 16
      %118 = vsyncadd [#allocation4], %s117
      %s120 = sshll.u32 [#allocation10], 4
      %s121 = int_to_ptr.vmem [resolvable:$true] %s120
      %123 = dma.vmem_to_hbm [thread:$0]  %s121, 16, %s4, [#allocation4]
    $region41: #{tpu_custom_call.1} parent=1 // pred_fallthru
      _
    // Predicated region
    $region42: #{tpu_custom_call.1} parent=1 // pred_check
      _
    $region43: #{tpu_custom_call.1} parent=1 // pred_check_branch
      %125 = sbr.rel (0) target = $region45
    $region44: #{tpu_custom_call.1} parent=1 // pred_region
      %126 = dma.done [#allocation4], 16
    $region45: #{tpu_custom_call.1} parent=1 // pred_fallthru
      _
    %127 = vsyncpa [#allocation3], 1
    %128 = vsyncpa [#allocation6], 1
    %129 = vsyncpa [#allocation9], 1
    %130 = vsyncpa [#allocation4], 1

</llo_original>
